<compile_context>
chip_gen: v5e
topology: v5e:2x2
jax: 0.10.0
libtpu: 0.0.40
codegen_flags: <defaults>
</compile_context>

<pallas_src>
import functools

import jax
import jax.numpy as jnp
from jax.experimental import pallas as pl
from jax.experimental.pallas import tpu as pltpu


_ACTIVATIONS = {
    "relu": lambda v: jnp.maximum(v, 0.0),
    "gelu": jax.nn.gelu,
    "silu": jax.nn.silu,
}


def _hyper_attn3_kernel(x_ref, wt_ref, m_ref, s_ref, o_ref, *, act):
    """One (TN, C) token tile of one batch element.

    x_ref : (TN, C) compute dtype (bf16 fast path / f32 exact path)
    wt_ref: (C, C)  compute dtype == W^T (pre-transposed), batch-invariant
    m_ref : (1, C)  f32 per-batch row (re-DMA'd only when b changes)
    s_ref : (1, C)  f32 per-batch row
    o_ref : (TN, C) output dtype
    """
    x = x_ref[...]
    wt = wt_ref[...]
    m = m_ref[...]
    s = s_ref[...]

    # h = act(x @ W^T + (x · m)) -- natural contraction on the pre-transposed
    # weight (MXU, f32 accumulation); rank-1 correction stays f32 (m is f32).
    xw = jnp.dot(x, wt, preferred_element_type=jnp.float32)          # (TN, C)
    xm = jnp.sum(x * m, axis=-1, keepdims=True)                      # (TN, 1)
    h = act(xw + xm)

    # out = h @ W^T + (h · s)
    hw = jnp.dot(h.astype(wt.dtype), wt, preferred_element_type=jnp.float32)
    hs = jnp.sum(h * s, axis=-1, keepdims=True)

    o_ref[...] = (hw + hs).astype(o_ref.dtype)


def _vmem_capacity_bytes():
    """Per-core VMEM capacity; conservative (v7x) fallback if query fails."""
    try:
        return int(pltpu.get_tpu_info().vmem_capacity_bytes)
    except Exception:
        return 64 * 1024 * 1024


def _pick_token_tile(n, cap):
    """Largest multiple-of-8 divisor of n not exceeding the VMEM-derived cap."""
    cap = int(max(cap, 8))
    if n <= cap:
        return n
    best = 0
    t = 8
    while t <= cap:
        if n % t == 0:
            best = t
        t += 8
    if best:
        return best
    # No multiple-of-8 divisor fits the budget; fall back to the smallest one.
    t = 8
    while t < n:
        if n % t == 0:
            return t
        t += 8
    return n


def hyper_attention3(x, w, wm, bm, ws, bs, *,
                     act_fn="relu",
                     compute_dtype=jnp.bfloat16,
                     out_dtype=None,
                     token_tile=None):
    """HyperAttention3 forward.

    x: (B, N, C) float; w, wm, ws: (C, C); bm, bs: (C,).
    compute_dtype=jnp.float32 reproduces the module exactly; the default bf16
    path streams x/W in bf16 with f32 MXU accumulation.
    """
    B, N, C = x.shape
    out_dtype = x.dtype if out_dtype is None else out_dtype
    act = _ACTIVATIONS[act_fn]

    # ---- stats prelude, hoisted out of the kernel (single fused pass over x) ----
    xf = x.astype(jnp.float32)
    mean = jnp.mean(xf, axis=1)                                   # (B, C)
    ex2 = jnp.mean(xf * xf, axis=1)                               # same pass (fused)
    if N > 1:
        var = jnp.maximum(ex2 - mean * mean, 0.0) * (float(N) / float(N - 1))
    else:
        var = jnp.full_like(mean, jnp.nan)   # matches torch.std(unbiased) at N == 1
    std = jnp.sqrt(var)
    m = mean @ wm.T + bm                                          # (B, C) f32
    s = std @ ws.T + bs                                           # (B, C) f32

    # ---- lane-dense channel padding (multiple of 128); zero-pad is inert ----
    c_pad = ((C + 127) // 128) * 128
    pad = c_pad - C
    wt = w.T                                                      # kernel does x @ wt
    if pad:
        x = jnp.pad(x, ((0, 0), (0, 0), (0, pad)))
        wt = jnp.pad(wt, ((0, pad), (0, pad)))
        m = jnp.pad(m, ((0, 0), (0, pad)))
        s = jnp.pad(s, ((0, 0), (0, pad)))

    x_in = x.astype(compute_dtype)          # bf16 fast path halves streamed x bytes
    wt_c = wt.astype(compute_dtype)
    m3 = m[:, None, :]                      # (B, 1, Cp): one row per batch block
    s3 = s[:, None, :]

    # ---- generation-aware VMEM budget & token-tile sizing ----
    cdt = jnp.dtype(compute_dtype).itemsize
    odt = jnp.dtype(out_dtype).itemsize
    cap_bytes = _vmem_capacity_bytes()          # 64 MiB v7x / 128 MiB v5e,v6e
    budget = (cap_bytes * 3) // 4               # ~48 MiB v7x, ~96 MiB v5e/v6e

    w_bytes = c_pad * c_pad * cdt
    # W's index_map is constant, so double-buffering buys nothing; request a
    # single buffer only when the 2x footprint threatens the (v7x) budget.
    single_buffer_w = 2 * w_bytes > cap_bytes // 8
    w_buffers = 1 if single_buffer_w else 2

    ms_bytes = 2 * 2 * 2 * c_pad * 4            # m & s blocks, double-buffered
    per_row = c_pad * (2 * cdt + 2 * odt + 3 * 4)   # dbuf x + dbuf out + f32 temps
    avail = budget - w_buffers * w_bytes - ms_bytes - (2 << 20)
    tn_cap = min(max(avail // per_row, 8), 4096)
    tn = token_tile if token_tile is not None else _pick_token_tile(N, tn_cap)
    assert N % tn == 0, "token_tile must divide N"
    num_t = N // tn

    est = (w_buffers * w_bytes + ms_bytes
           + 2 * tn * c_pad * cdt               # x tile, double-buffered
           + 2 * tn * c_pad * odt               # out tile, double-buffered
           + 3 * tn * c_pad * 4                 # in-kernel f32 temporaries
           + (2 << 20))                         # slack
    vmem_limit = int(min(max(est, 32 * 1024 * 1024), cap_bytes))

    w_spec_kwargs = dict(pipeline_mode=pl.Buffered(1)) if single_buffer_w else {}

    out = pl.pallas_call(
        functools.partial(_hyper_attn3_kernel, act=act),
        out_shape=jax.ShapeDtypeStruct((B, N, c_pad), out_dtype),
        grid=(B, num_t),
        in_specs=[
            pl.BlockSpec((pl.Squeezed(), tn, c_pad), lambda b, t: (b, t, 0)),   # x tile
            pl.BlockSpec((c_pad, c_pad), lambda b, t: (0, 0), **w_spec_kwargs),  # W^T (resident)
            pl.BlockSpec((pl.Squeezed(), 1, c_pad), lambda b, t: (b, 0, 0)),    # m row
            pl.BlockSpec((pl.Squeezed(), 1, c_pad), lambda b, t: (b, 0, 0)),    # s row
        ],
        out_specs=pl.BlockSpec((pl.Squeezed(), tn, c_pad), lambda b, t: (b, t, 0)),
        compiler_params=pltpu.CompilerParams(
            dimension_semantics=("parallel", "parallel"),
            vmem_limit_bytes=vmem_limit,
        ),
    )(x_in, wt_c, m3, s3)

    return out[..., :C] if pad else out


def _reference(x, w, wm, bm, ws, bs):
    """Pure-JAX f32 reference mirroring the PyTorch forward exactly."""
    B, N, C = x.shape
    mean = jnp.mean(x, axis=1, keepdims=True)                          # (B, 1, C)
    std = jnp.sqrt(jnp.sum((x - mean) ** 2, axis=1, keepdims=True) / (N - 1))
    m = mean @ wm.T + bm                                               # (B, 1, C)
    s = std @ ws.T + bs
    w1 = w[None] + m                                                   # (B, C, C)
    w2 = w[None] + s
    h = jnp.maximum(jnp.einsum("bnc,bic->bni", x, w1), 0.0)
    return jnp.einsum("bnc,bic->bni", h, w2)


if __name__ == "__main__":
    B, N, C = 2, 16, 32  # dim = 32

    key = jax.random.PRNGKey(0)
    kx, kw, kwm, kbm, kws, kbs = jax.random.split(key, 6)

    x = jax.random.normal(kx, (B, N, C), dtype=jnp.float32)

    # Parameters (deterministic, shapes per module __init__):
    w = 0.02 * jax.random.normal(kw, (C, C), dtype=jnp.float32)        # self.weight squeezed
    lim = 1.0 / float(C) ** 0.5
    wm = jax.random.uniform(kwm, (C, C), jnp.float32, -lim, lim)       # mean_proj.weight
    bm = jax.random.uniform(kbm, (C,), jnp.float32, -lim, lim)         # mean_proj.bias
    ws = jax.random.uniform(kws, (C, C), jnp.float32, -lim, lim)       # std_proj.weight
    bs = jax.random.uniform(kbs, (C,), jnp.float32, -lim, lim)         # std_proj.bias

    ref = _reference(x, w, wm, bm, ws, bs)

    # 1) exact-precision path: f32 matmuls, must match the reference tightly.
    out_f32 = jax.block_until_ready(
        hyper_attention3(x, w, wm, bm, ws, bs, compute_dtype=jnp.float32))
    assert out_f32.shape == (B, N, C)
    assert jnp.allclose(out_f32, ref, atol=1e-4, rtol=1e-4), "f32 path mismatch"

    # 2) default fast path: bf16 streamed x + bf16 MXU with f32 accumulation.
    out_bf16 = jax.block_until_ready(hyper_attention3(x, w, wm, bm, ws, bs))
    assert out_bf16.shape == (B, N, C)
    assert jnp.allclose(out_bf16, ref, atol=1e-1, rtol=5e-2), "bf16 path mismatch"

    # 3) multi-tile token grid (exercises the (B, N//TN) pipelined path).
    out_tiled = jax.block_until_ready(
        hyper_attention3(x, w, wm, bm, ws, bs, compute_dtype=jnp.float32,
                         token_tile=8))
    assert jnp.allclose(out_tiled, ref, atol=1e-4, rtol=1e-4), "tiled path mismatch"

    print("KERNEL_OK")
</pallas_src>

<mosaic_0001>
module attributes {stable_mosaic.version = 11 : i64} {
  func.func @_hyper_attn3_kernel(%arg0: i32, %arg1: i32, %arg2: memref<1x16x128xf32, #tpu.memory_space<vmem>>, %arg3: memref<128x128xf32, #tpu.memory_space<vmem>>, %arg4: memref<1x1x128xf32, #tpu.memory_space<vmem>>, %arg5: memref<1x1x128xf32, #tpu.memory_space<vmem>>, %arg6: memref<1x16x128xf32, #tpu.memory_space<vmem>>) attributes {dimension_semantics = [#tpu.dimension_semantics<parallel>, #tpu.dimension_semantics<parallel>], iteration_bounds = array<i64: 2, 1>, scalar_prefetch = 0 : i64, scratch_operands = 0 : i64, tpu.core_type = #tpu.core_type<tc>, window_params = [{transform_indices = @transform_0, window_bounds = array<i64: 1, 16, 128>}, {pipeline_mode = #tpu.pipeline_mode<synchronous>, transform_indices = @transform_1, window_bounds = array<i64: 128, 128>}, {transform_indices = @transform_2, window_bounds = array<i64: 1, 1, 128>}, {transform_indices = @transform_3, window_bounds = array<i64: 1, 1, 128>}, {transform_indices = @transform_4, window_bounds = array<i64: 1, 16, 128>}]} {
    %c0 = arith.constant 0 : index
    %c0_0 = arith.constant 0 : index
    %c0_1 = arith.constant 0 : index
    %0 = vector.load %arg2[%c0, %c0_0, %c0_1] : memref<1x16x128xf32, #tpu.memory_space<vmem>>, vector<1x16x128xf32>
    %1 = vector.shape_cast %0 : vector<1x16x128xf32> to vector<16x128xf32>
    %c0_2 = arith.constant 0 : index
    %c0_3 = arith.constant 0 : index
    %2 = vector.load %arg3[%c0_2, %c0_3] : memref<128x128xf32, #tpu.memory_space<vmem>>, vector<128x128xf32>
    %c0_4 = arith.constant 0 : index
    %c0_5 = arith.constant 0 : index
    %c0_6 = arith.constant 0 : index
    %3 = vector.load %arg4[%c0_4, %c0_5, %c0_6] : memref<1x1x128xf32, #tpu.memory_space<vmem>>, vector<1x1x128xf32>
    %4 = vector.shape_cast %3 : vector<1x1x128xf32> to vector<1x128xf32>
    %c0_7 = arith.constant 0 : index
    %c0_8 = arith.constant 0 : index
    %c0_9 = arith.constant 0 : index
    %5 = vector.load %arg5[%c0_7, %c0_8, %c0_9] : memref<1x1x128xf32, #tpu.memory_space<vmem>>, vector<1x1x128xf32>
    %6 = vector.shape_cast %5 : vector<1x1x128xf32> to vector<1x128xf32>
    %cst = arith.constant dense<0.000000e+00> : vector<16x128xf32>
    %7 = tpu.matmul %1, %2, %cst {dimension_numbers = #tpu.dot_dimension_numbers<[1], [0], [0], [1], [0, 0, 1, 1], [], []>} : vector<16x128xf32>, vector<128x128xf32>, vector<16x128xf32> -> vector<16x128xf32>
    %8 = vector.broadcast %4 : vector<1x128xf32> to vector<16x128xf32>
    %9 = arith.mulf %1, %8 : vector<16x128xf32>
    %cst_10 = arith.constant dense<0.000000e+00> : vector<16xf32>
    %10 = vector.multi_reduction <add>, %9, %cst_10 [1] : vector<16x128xf32> to vector<16xf32>
    %11 = vector.shape_cast %10 : vector<16xf32> to vector<16x1xf32>
    %12 = vector.broadcast %11 : vector<16x1xf32> to vector<16x128xf32>
    %13 = arith.addf %7, %12 : vector<16x128xf32>
    %cst_11 = arith.constant 0.000000e+00 : f32
    %14 = vector.broadcast %cst_11 : f32 to vector<16x128xf32>
    %15 = arith.maximumf %13, %14 : vector<16x128xf32>
    %cst_12 = arith.constant dense<0.000000e+00> : vector<16x128xf32>
    %16 = tpu.matmul %15, %2, %cst_12 {dimension_numbers = #tpu.dot_dimension_numbers<[1], [0], [0], [1], [0, 0, 1, 1], [], []>} : vector<16x128xf32>, vector<128x128xf32>, vector<16x128xf32> -> vector<16x128xf32>
    %17 = vector.broadcast %6 : vector<1x128xf32> to vector<16x128xf32>
    %18 = arith.mulf %15, %17 : vector<16x128xf32>
    %cst_13 = arith.constant dense<0.000000e+00> : vector<16xf32>
    %19 = vector.multi_reduction <add>, %18, %cst_13 [1] : vector<16x128xf32> to vector<16xf32>
    %20 = vector.shape_cast %19 : vector<16xf32> to vector<16x1xf32>
    %21 = vector.broadcast %20 : vector<16x1xf32> to vector<16x128xf32>
    %22 = arith.addf %16, %21 : vector<16x128xf32>
    %c0_14 = arith.constant 0 : index
    %c0_15 = arith.constant 0 : index
    %c0_16 = arith.constant 0 : index
    %23 = vector.load %arg6[%c0_14, %c0_15, %c0_16] : memref<1x16x128xf32, #tpu.memory_space<vmem>>, vector<1x16x128xf32>
    %24 = vector.shape_cast %23 : vector<1x16x128xf32> to vector<16x128xf32>
    %25 = vector.shape_cast %22 : vector<16x128xf32> to vector<1x16x128xf32>
    tpu.vector_store %arg6[%c0_14, %c0_15, %c0_16], %25 {strides = array<i32>} : memref<1x16x128xf32, #tpu.memory_space<vmem>>, vector<1x16x128xf32>,
    return
  }
  func.func @transform_0(%arg0: i32, %arg1: i32) -> (i32, i32, i32) {
    %c0_i32 = arith.constant 0 : i32
    %c0_i32_0 = arith.constant 0 : i32
    return %arg0, %arg1, %c0_i32 : i32, i32, i32
  }
  func.func @transform_1(%arg0: i32, %arg1: i32) -> (i32, i32) {
    %c0_i32 = arith.constant 0 : i32
    %c0_i32_0 = arith.constant 0 : i32
    %c0_i32_1 = arith.constant 0 : i32
    return %c0_i32, %c0_i32_0 : i32, i32
  }
  func.func @transform_2(%arg0: i32, %arg1: i32) -> (i32, i32, i32) {
    %c0_i32 = arith.constant 0 : i32
    %c0_i32_0 = arith.constant 0 : i32
    %c0_i32_1 = arith.constant 0 : i32
    return %arg0, %c0_i32, %c0_i32_0 : i32, i32, i32
  }
  func.func @transform_3(%arg0: i32, %arg1: i32) -> (i32, i32, i32) {
    %c0_i32 = arith.constant 0 : i32
    %c0_i32_0 = arith.constant 0 : i32
    %c0_i32_1 = arith.constant 0 : i32
    return %arg0, %c0_i32, %c0_i32_0 : i32, i32, i32
  }
  func.func @transform_4(%arg0: i32, %arg1: i32) -> (i32, i32, i32) {
    %c0_i32 = arith.constant 0 : i32
    %c0_i32_0 = arith.constant 0 : i32
    return %arg0, %arg1, %c0_i32 : i32, i32, i32
  }
}

</mosaic_0001>

<llo_original>
// kernel: tpu_custom_call.1
$region0: #{tpu_custom_call.1}
  #allocation0 [shape = 'u32[]', space=smem, size = 0x4, offset = 0x4, fixed_abs, tag = 'smem constant byte address 0x4 - core index']
  #allocation1 [shape = 'u32[72,128]{1,0:T(1,128)}', space=vmem, size = 0x9000, scoped, tag = 'internal scratch']
  %s0 = inlined_call_operand.hbm [shape: f32[2,16,128], index: 0, kind: input, shape index: {}]
  %s1 = inlined_call_operand.hbm [shape: f32[128,128], index: 1, kind: input, shape index: {}]
  %s2 = inlined_call_operand.hbm [shape: f32[2,1,128], index: 2, kind: input, shape index: {}]
  %s3 = inlined_call_operand.vmem [shape: f32[2,1,128], index: 3, kind: input, shape index: {}]
  %s4 = inlined_call_operand.hbm [shape: f32[2,16,128], index: 4, kind: output, shape index: {}]
  %s5 = sld [smem:[#allocation0]]
  $region61: #{tpu_custom_call.1} parent=0
    _
  %s7 = ssub.s32 1, %s5
  %s8 = scalar_select 0, %s7, %s5
  $region1: #{tpu_custom_call.1} parent=0
    #allocation2 [shape = 'u8[16384]{0}', space=vmem, size = 0x4000, scoped, tag = 'input window, operand 0']
    #allocation3 [shape = 's32[2]{0}', space=sflag, size = 0x8, scoped, tag = 'scoped memory for tpu_custom_call.1']
    #allocation4 [shape = 's32[2]{0}', space=sflag, size = 0x8, scoped, tag = 'scoped memory for tpu_custom_call.1']
    #allocation5 [shape = 'u8[65536]{0}', space=vmem, size = 0x10000, scoped, tag = 'input window, operand 1, single buffered']
    #allocation6 [shape = 's32[1]{0}', space=sflag, size = 0x4, scoped, tag = 'scoped memory for tpu_custom_call.1']
    #allocation7 [shape = 'u8[1024]{0}', space=vmem, size = 0x400, scoped, tag = 'input window, operand 2']
    #allocation8 [shape = 'u8[16384]{0}', space=vmem, size = 0x4000, scoped, tag = 'output window, operand 0']
    %9 = vsyncpa [#allocation3], 0
    %s10 = scalar_lea.sflag [#allocation3], 1
    %11 = vsyncpa %s10, 0
    %12 = vsyncpa [#allocation6], 0
    %13 = vsyncpa [#allocation4], 0
    %s14 = scalar_lea.sflag [#allocation4], 1
    %15 = vsyncpa %s14, 0
    loop: start=0, step=1, limit=4
    $region2: #{tpu_custom_call.1} parent=1 // loop_pre_header
      _
    $region3: #{tpu_custom_call.1} parent=1 // loop_header
      %s17 = sphi 0, %s21
      %p18 = scmp.ge.s32.totalorder %s17, 4
      %s24 = sphi 0, %s36
      %s25 = sphi 0, %s32
      %s26 = sphi 0, %s24
      %s27 = sphi 0, %s25
      %s28 = sphi 0, %s26
      %s29 = sphi 0, %s27
      %s41 = sphi 0, %s43
      %s44 = sphi 0, %s41
      %s45 = sphi 0, %s44
      %s61 = sphi 0, %s45
      %s65 = sphi 0, %s65
      %s67 = sphi 0, %s65
      %s68 = sphi 0, %s67
      %s82 = sphi 0, %s68
      %s88 = sphi 0, %s90
      %s91 = sphi 0, %s88
      %s92 = sphi 0, %s91
      %s108 = sphi 0, %s92
      %s114 = sphi 0, %s116
      %s117 = sphi 0, %s114
      %s118 = sphi 0, %s117
      %s134 = sphi 0, %s118
      %s142 = sphi 0, %s144
      %s145 = sphi 0, %s142
      %s146 = sphi 0, %s145
      %s162 = sphi 0, %s146
    $region4: #{tpu_custom_call.1} parent=1 // loop_header_branch
      %20 = sbr.rel (%p18) target = $region8
    $region5: #{tpu_custom_call.1} parent=1 // loop_body
      %s22 = ssub.s32 %s17, 1
      %s23 = ssub.s32 %s17, 2
      %s30 = sadd.s32 1, %s25
      %p31 = scmp.ge.s32.totalorder %s30, 1
      %s32 = scalar_select %p31, 0, %s30
      %s33 = sadd.s32 1, %s24
      %s34 = scalar_select %p31, %s33, %s24
      %p35 = scmp.ge.s32.totalorder %s34, 2
      %s36 = scalar_select %p35, 0, %s34
      %s37 = ssub.s32 %s24, %s36
      %s38 = ssub.s32 %s25, %s32
      %s39 = sor.u32 %s37, %s38
      %p40 = scmp.eq.s32.totalorder %s39, 0
      %s42 = sadd.s32 %s41, 1
      %s43 = scalar_select %p40, %s41, %s42
      %p46 = pneg %p40
      %p47 = scmp.eq.s32.totalorder %s17, 1
      %p48 = por %p46, %p47
      %p49 = scmp.ne.s32.totalorder %s41, %s44
      %p50 = scmp.eq.s32.totalorder %s17, 0
      %p51 = por %p49, %p50
      %p52 = scmp.ne.s32.totalorder %s41, %s44
      %p53 = scmp.eq.s32.totalorder %s22, 1
      %p54 = por %p52, %p53
      %p55 = scmp.ne.s32.totalorder %s44, %s45
      %p56 = scmp.eq.s32.totalorder %s22, 0
      %p57 = por %p55, %p56
      %p58 = scmp.ne.s32.totalorder %s44, %s45
      %p59 = scmp.eq.s32.totalorder %s23, 1
      %p60 = por %p58, %p59
      %p62 = scmp.ne.s32.totalorder %s45, %s61
      %p63 = scmp.eq.s32.totalorder %s23, 0
      %p64 = por %p62, %p63
      %s66 = sadd.s32 %s65, 1
      %p69 = scmp.eq.s32.totalorder %s17, 1
      %p70 = scmp.ne.s32.totalorder %s65, %s67
      %p71 = scmp.eq.s32.totalorder %s17, 0
      %p72 = por %p70, %p71
      %p73 = scmp.ne.s32.totalorder %s65, %s67
      %p74 = scmp.eq.s32.totalorder %s22, 1
      %p75 = por %p73, %p74
      %p76 = scmp.ne.s32.totalorder %s67, %s68
      %p77 = scmp.eq.s32.totalorder %s22, 0
      %p78 = por %p76, %p77
      %p79 = scmp.ne.s32.totalorder %s67, %s68
      %p80 = scmp.eq.s32.totalorder %s23, 1
      %p81 = por %p79, %p80
      %p83 = scmp.ne.s32.totalorder %s68, %s82
      %p84 = scmp.eq.s32.totalorder %s23, 0
      %p85 = por %p83, %p84
      %s86 = ssub.s32 %s24, %s36
      %p87 = scmp.eq.s32.totalorder %s86, 0
      %s89 = sadd.s32 %s88, 1
      %s90 = scalar_select %p87, %s88, %s89
      %p93 = pneg %p87
      %p94 = scmp.eq.s32.totalorder %s17, 1
      %p95 = por %p93, %p94
      %p96 = scmp.ne.s32.totalorder %s88, %s91
      %p97 = scmp.eq.s32.totalorder %s17, 0
      %p98 = por %p96, %p97
      %p99 = scmp.ne.s32.totalorder %s88, %s91
      %p100 = scmp.eq.s32.totalorder %s22, 1
      %p101 = por %p99, %p100
      %p102 = scmp.ne.s32.totalorder %s91, %s92
      %p103 = scmp.eq.s32.totalorder %s22, 0
      %p104 = por %p102, %p103
      %p105 = scmp.ne.s32.totalorder %s91, %s92
      %p106 = scmp.eq.s32.totalorder %s23, 1
      %p107 = por %p105, %p106
      %p109 = scmp.ne.s32.totalorder %s92, %s108
      %p110 = scmp.eq.s32.totalorder %s23, 0
      %p111 = por %p109, %p110
      %s112 = ssub.s32 %s24, %s36
      %p113 = scmp.eq.s32.totalorder %s112, 0
      %s115 = sadd.s32 %s114, 1
      %s116 = scalar_select %p113, %s114, %s115
      %p119 = pneg %p113
      %p120 = scmp.eq.s32.totalorder %s17, 1
      %p121 = por %p119, %p120
      %p122 = scmp.ne.s32.totalorder %s114, %s117
      %p123 = scmp.eq.s32.totalorder %s17, 0
      %p124 = por %p122, %p123
      %p125 = scmp.ne.s32.totalorder %s114, %s117
      %p126 = scmp.eq.s32.totalorder %s22, 1
      %p127 = por %p125, %p126
      %p128 = scmp.ne.s32.totalorder %s117, %s118
      %p129 = scmp.eq.s32.totalorder %s22, 0
      %p130 = por %p128, %p129
      %p131 = scmp.ne.s32.totalorder %s117, %s118
      %p132 = scmp.eq.s32.totalorder %s23, 1
      %p133 = por %p131, %p132
      %p135 = scmp.ne.s32.totalorder %s118, %s134
      %p136 = scmp.eq.s32.totalorder %s23, 0
      %p137 = por %p135, %p136
      %s138 = ssub.s32 %s24, %s36
      %s139 = ssub.s32 %s25, %s32
      %s140 = sor.u32 %s138, %s139
      %p141 = scmp.eq.s32.totalorder %s140, 0
      %s143 = sadd.s32 %s142, 1
      %s144 = scalar_select %p141, %s142, %s143
      %p147 = pneg %p141
      %p148 = scmp.eq.s32.totalorder %s17, 1
      %p149 = por %p147, %p148
      %p150 = scmp.ne.s32.totalorder %s142, %s145
      %p151 = scmp.eq.s32.totalorder %s17, 0
      %p152 = por %p150, %p151
      %p153 = scmp.ne.s32.totalorder %s142, %s145
      %p154 = scmp.eq.s32.totalorder %s22, 1
      %p155 = por %p153, %p154
      %p156 = scmp.ne.s32.totalorder %s145, %s146
      %p157 = scmp.eq.s32.totalorder %s22, 0
      %p158 = por %p156, %p157
      %p159 = scmp.ne.s32.totalorder %s145, %s146
      %p160 = scmp.eq.s32.totalorder %s23, 1
      %p161 = por %p159, %p160
      %p163 = scmp.ne.s32.totalorder %s146, %s162
      %p164 = scmp.eq.s32.totalorder %s23, 0
      %p165 = por %p163, %p164
      %p166 = scmp.le.s32.totalorder 1, %s17
      %p167 = scmp.lt.s32.totalorder %s17, 3
      %p168 = pnand %p166, %p167
      %p169 = pneg %p168
      // Predicated region
      $region9: #{tpu_custom_call.1} parent=5 // pred_check
        _
      $region10: #{tpu_custom_call.1} parent=5 // pred_check_branch
        %171 = sbr.rel (%p168) target = $region12
      $region11: #{tpu_custom_call.1} parent=5 // pred_region
        %s172 = ssub.s32 %s17, 1
        // Predicated region
        $region13: #{tpu_custom_call.1} parent=11 // pred_check
          %p173 = pneg %p78
        $region14: #{tpu_custom_call.1} parent=11 // pred_check_branch
          %175 = sbr.rel (%p173) target = $region16
        $region15: #{tpu_custom_call.1} parent=11 // pred_region
          %177 = vsyncadd [#allocation6], 0
          %s178 = sshll.u32 %s1, 4
          %s179 = int_to_ptr.hbm [resolvable:$true] %s178
          %s180 = sshll.u32 [#allocation5], 4
          %s181 = int_to_ptr.vmem [resolvable:$true] %s180
          %186 = dma.hbm_to_vmem [thread:$0]  %s179, 2048, %s181, [#allocation6], 128, 128, 8
        $region16: #{tpu_custom_call.1} parent=11 // pred_fallthru
          _
      $region12: #{tpu_custom_call.1} parent=5 // pred_fallthru
        _
      %p187 = scmp.lt.s32.totalorder %s17, 2
      // Predicated region
      $region17: #{tpu_custom_call.1} parent=5 // pred_check
        %p188 = pneg %p187
      $region18: #{tpu_custom_call.1} parent=5 // pred_check_branch
        %190 = sbr.rel (%p188) target = $region20
      $region19: #{tpu_custom_call.1} parent=5 // pred_region
        // Predicated region
        $region21: #{tpu_custom_call.1} parent=19 // pred_check
          %p191 = pneg %p51
        $region22: #{tpu_custom_call.1} parent=19 // pred_check_branch
          %193 = sbr.rel (%p191) target = $region24
        $region23: #{tpu_custom_call.1} parent=19 // pred_region
          %s194 = sand.u32 %s17, 1
          %s195 = scalar_lea.sflag [#allocation3], %s194
          %s196 = sand.u32 %s41, 1
          %s197 = smul.addr %s196, 16
          %s198 = scalar_lea.vmem [#allocation2], %s197
          %s199 = smul.u32 2, %s25
          %201 = vsyncadd %s195, 0
          %s202 = smul.addr %s24, 2
          %s203 = sadd.s32 %s199, %s202
          %s204 = smul.addr %s203, 8
          %s205 = scalar_lea.hbm %s0, %s204
          %s206 = sshll.u32 %s205, 4
          %s207 = int_to_ptr.hbm [resolvable:$true] %s206
          %s208 = sshll.u32 %s198, 4
          %s209 = int_to_ptr.vmem [resolvable:$true] %s208
          %214 = dma.hbm_to_vmem [thread:$0]  %s207, 256, %s209, %s195, 128, 128, 8
        $region24: #{tpu_custom_call.1} parent=19 // pred_fallthru
          _
        // Predicated region
        $region25: #{tpu_custom_call.1} parent=19 // pred_check
          %p215 = pneg %p98
        $region26: #{tpu_custom_call.1} parent=19 // pred_check_branch
          %217 = sbr.rel (%p215) target = $region28
        $region27: #{tpu_custom_call.1} parent=19 // pred_region
          %s218 = sand.u32 %s17, 1
          %s219 = scalar_lea.sflag [#allocation3], %s218
          %s220 = sand.u32 %s88, 1
          %s221 = scalar_lea.vmem [#allocation7], %s220
          %223 = vsyncadd %s219, 0
          %s224 = scalar_lea.hbm %s2, %s24
          %s226 = sshll.u32 %s224, 4
          %s227 = int_to_ptr.hbm [resolvable:$true] %s226
          %s228 = sshll.u32 %s221, 4
          %s229 = int_to_ptr.vmem [resolvable:$true] %s228
          %231 = dma.hbm_to_vmem [thread:$0]  %s227, 16, %s229, %s219
        $region28: #{tpu_custom_call.1} parent=19 // pred_fallthru
          _
        // Predicated region
        $region29: #{tpu_custom_call.1} parent=19 // pred_check
          %p232 = pneg %p124
        $region30: #{tpu_custom_call.1} parent=19 // pred_check_branch
          %234 = sbr.rel (%p232) target = $region32
        $region31: #{tpu_custom_call.1} parent=19 // pred_region
          %p235 = scmp.lt.s32.totalorder %s24, 1
          %s236 = scalar_select %p235, %s24, 1
          %s237 = scalar_lea.vmem %s3, %s236
        $region32: #{tpu_custom_call.1} parent=19 // pred_fallthru
          _
      $region20: #{tpu_custom_call.1} parent=5 // pred_fallthru
        _
      %p238 = scmp.le.s32.totalorder 1, %s17
      %p239 = scmp.lt.s32.totalorder %s17, 3
      %p240 = pnand %p238, %p239
      %p241 = pneg %p240
      // Predicated region
      $region33: #{tpu_custom_call.1} parent=5 // pred_check
        _
      $region34: #{tpu_custom_call.1} parent=5 // pred_check_branch
        %243 = sbr.rel (%p240) target = $region36
      $region35: #{tpu_custom_call.1} parent=5 // pred_region
        %s244 = ssub.s32 %s17, 1
        %s245 = sand.u32 %s22, 1
        %s246 = scalar_lea.sflag [#allocation3], %s245
        %s247 = sand.u32 %s44, 1
        %s248 = smul.addr %s247, 16
        %s249 = scalar_lea.vmem [#allocation2], %s248
        // Predicated region
        $region37: #{tpu_custom_call.1} parent=35 // pred_check
          %p250 = pneg %p57
        $region38: #{tpu_custom_call.1} parent=35 // pred_check_branch
          %252 = sbr.rel (%p250) target = $region40
        $region39: #{tpu_custom_call.1} parent=35 // pred_region
          %254 = dma.done %s246, 256
        $region40: #{tpu_custom_call.1} parent=35 // pred_fallthru
          _
        // Predicated region
        $region41: #{tpu_custom_call.1} parent=35 // pred_check
          %p255 = pneg %p78
        $region42: #{tpu_custom_call.1} parent=35 // pred_check_branch
          %257 = sbr.rel (%p255) target = $region44
        $region43: #{tpu_custom_call.1} parent=35 // pred_region
          %259 = dma.done [#allocation6], 2048
        $region44: #{tpu_custom_call.1} parent=35 // pred_fallthru
          _
        %s260 = sand.u32 %s22, 1
        %s261 = scalar_lea.sflag [#allocation3], %s260
        %s262 = sand.u32 %s91, 1
        %s263 = scalar_lea.vmem [#allocation7], %s262
        // Predicated region
        $region45: #{tpu_custom_call.1} parent=35 // pred_check
          %p264 = pneg %p104
        $region46: #{tpu_custom_call.1} parent=35 // pred_check_branch
          %266 = sbr.rel (%p264) target = $region48
        $region47: #{tpu_custom_call.1} parent=35 // pred_region
          %268 = dma.done %s261, 16
        $region48: #{tpu_custom_call.1} parent=35 // pred_fallthru
          _
        %s269 = sand.u32 %s22, 1
        %s270 = scalar_lea.sflag [#allocation3], %s269
        %s271 = sand.u32 %s44, 1
        %s272 = smul.addr %s271, 16
        %s273 = scalar_lea.vmem [#allocation2], %s272
        %p274 = pneg %p57
        %p275 = pneg %p54
        %p276 = pneg %p78
        %p277 = pneg %p75
        %s278 = sand.u32 %s22, 1
        %s279 = scalar_lea.sflag [#allocation3], %s278
        %s280 = sand.u32 %s91, 1
        %s281 = scalar_lea.vmem [#allocation7], %s280
        %p282 = pneg %p104
        %p283 = pneg %p101
        %p284 = scmp.lt.s32.totalorder %s26, 1
        %s285 = scalar_select %p284, %s26, 1
        %s286 = scalar_lea.vmem %s3, %s285
        %p287 = pneg %p130
        %p288 = pneg %p127
        %p289 = pneg %p158
        %p290 = pneg %p155
        %s291 = sand.u32 %s145, 1
        %s292 = scalar_lea.sflag [#allocation4], %s291
        %s293 = sand.u32 %s145, 1
        %s294 = smul.addr %s293, 16
        %s295 = scalar_lea.vmem [#allocation8], %s294
        %s296 = smul.u32 2, %s27
        %p297 = scmp.lt.s32.totalorder %s26, 1
        %s298 = scalar_select %p297, %s26, 1
        %s299 = scalar_lea.vmem %s3, %s298
        %s300 = smul.u32 2, %s27
        %v301 = vld [vmem:[%s249] sm:$0xff]
        %v302 = vld [vmem:[%s249 + $0x8] sm:$0xff]
        %v303 = vld [vmem:[#allocation5] sm:$0xff]
        %v304 = vld [vmem:[#allocation5 + $0x8] sm:$0xff]
        %v305 = vld [vmem:[#allocation5 + $0x10] sm:$0xff]
        %v306 = vld [vmem:[#allocation5 + $0x18] sm:$0xff]
        %v307 = vld [vmem:[#allocation5 + $0x20] sm:$0xff]
        %v308 = vld [vmem:[#allocation5 + $0x28] sm:$0xff]
        %v309 = vld [vmem:[#allocation5 + $0x30] sm:$0xff]
        %v310 = vld [vmem:[#allocation5 + $0x38] sm:$0xff]
        %v311 = vld [vmem:[#allocation5 + $0x40] sm:$0xff]
        %v312 = vld [vmem:[#allocation5 + $0x48] sm:$0xff]
        %v313 = vld [vmem:[#allocation5 + $0x50] sm:$0xff]
        %v314 = vld [vmem:[#allocation5 + $0x58] sm:$0xff]
        %v315 = vld [vmem:[#allocation5 + $0x60] sm:$0xff]
        %v316 = vld [vmem:[#allocation5 + $0x68] sm:$0xff]
        %v317 = vld [vmem:[#allocation5 + $0x70] sm:$0xff]
        %v318 = vld [vmem:[#allocation5 + $0x78] sm:$0xff]
        %v319 = vld [vmem:[%s263] sm:$0x1]
        %v320 = vld [vmem:[%s299] sm:$0x1]
        %v322 = vperm.slane %v319, 0
        %v324 = vmul.f32 %v301, %v322
        %v325 = vmul.f32 %v302, %v322
        %326 = vadd.xlane.f32.xlu0 %v324
        %v327 = vpop.xlane.xlu0 %326
        %328 = vadd.xlane.f32.xlu0 %v325
        %v329 = vpop.xlane.xlu0 %328
        %330 = vmatpush.msra.mxu0 %v318
        %331 = vmatpush.msra.mxu0 %v317
        %332 = vmatpush.msra.mxu0 %v316
        %333 = vmatpush.msra.mxu0 %v315
        %334 = vmatpush.msra.mxu0 %v314
        %335 = vmatpush.msra.mxu0 %v313
        %336 = vmatpush.msra.mxu0 %v312
        %337 = vmatpush.msra.mxu0 %v311
        %338 = vmatpush.msra.mxu0 %v310
        %339 = vmatpush.msra.mxu0 %v309
        %340 = vmatpush.msra.mxu0 %v308
        %341 = vmatpush.msra.mxu0 %v307
        %342 = vmatpush.msra.mxu0 %v306
        %343 = vmatpush.msra.mxu0 %v305
        %344 = vmatpush.msra.mxu0 %v304
        %345 = vmatpush.msra.mxu0 %v303
        %346 = vmatmul.f32.gmra.mxu0 %v301
        %v347 = vpop.f32.mrf.mxu0
        %v348 = vadd.f32 %v327, %v347
        %349 = vmatmul.f32.gmra.mxu0 %v302
        %v350 = vpop.f32.mrf.mxu0
        %v351 = vadd.f32 %v329, %v350
        %352 = vdwg.mxu0
        %v353 = vmax.f32 %v348, 0.0
        %v354 = vmax.f32 %v351, 0.0
        %v356 = vperm.slane %v320, 0
        %v358 = vmul.f32 %v353, %v356
        %v359 = vmul.f32 %v354, %v356
        %360 = vadd.xlane.f32.xlu0 %v358
        %v361 = vpop.xlane.xlu0 %360
        %362 = vadd.xlane.f32.xlu0 %v359
        %v363 = vpop.xlane.xlu0 %362
        %364 = vmatpush.msra.mxu0 %v318
        %365 = vmatpush.msra.mxu0 %v317
        %366 = vmatpush.msra.mxu0 %v316
        %367 = vmatpush.msra.mxu0 %v315
        %368 = vmatpush.msra.mxu0 %v314
        %369 = vmatpush.msra.mxu0 %v313
        %370 = vmatpush.msra.mxu0 %v312
        %371 = vmatpush.msra.mxu0 %v311
        %372 = vmatpush.msra.mxu0 %v310
        %373 = vmatpush.msra.mxu0 %v309
        %374 = vmatpush.msra.mxu0 %v308
        %375 = vmatpush.msra.mxu0 %v307
        %376 = vmatpush.msra.mxu0 %v306
        %377 = vmatpush.msra.mxu0 %v305
        %378 = vmatpush.msra.mxu0 %v304
        %379 = vmatpush.msra.mxu0 %v303
        %380 = vmatmul.f32.gmra.mxu0 %v353
        %v381 = vpop.f32.mrf.mxu0
        %v382 = vadd.f32 %v361, %v381
        %383 = vmatmul.f32.gmra.mxu0 %v354
        %v384 = vpop.f32.mrf.mxu0
        %v385 = vadd.f32 %v363, %v384
        %386 = vdwg.mxu0
        %387 = vst [vmem:[%s295] sm:$0xff] %v382
        %388 = vst [vmem:[%s295 + $0x8] sm:$0xff] %v385
        %s389 = sand.u32 %s145, 1
        %s390 = scalar_lea.sflag [#allocation4], %s389
        %s391 = sand.u32 %s145, 1
        %s392 = smul.addr %s391, 16
        %s393 = scalar_lea.vmem [#allocation8], %s392
        // Predicated region
        $region49: #{tpu_custom_call.1} parent=35 // pred_check
          %p394 = pneg %p155
        $region50: #{tpu_custom_call.1} parent=35 // pred_check_branch
          %396 = sbr.rel (%p394) target = $region52
        $region51: #{tpu_custom_call.1} parent=35 // pred_region
          %s397 = smul.u32 2, %s27
          %399 = vsyncadd %s390, 0
          %s400 = smul.addr %s26, 2
          %s401 = sadd.s32 %s397, %s400
          %s402 = smul.addr %s401, 8
          %s403 = scalar_lea.hbm %s4, %s402
          %s404 = sshll.u32 %s393, 4
          %s405 = int_to_ptr.vmem [resolvable:$true] %s404
          %s406 = sshll.u32 %s403, 4
          %s407 = int_to_ptr.hbm [resolvable:$true] %s406
          %412 = dma.vmem_to_hbm [thread:$0]  %s405, 256, %s407, %s390, 128, 128, 8
        $region52: #{tpu_custom_call.1} parent=35 // pred_fallthru
          _
      $region36: #{tpu_custom_call.1} parent=5 // pred_fallthru
        _
      %p413 = scmp.le.s32.totalorder 2, %s17
      // Predicated region
      $region53: #{tpu_custom_call.1} parent=5 // pred_check
        %p414 = pneg %p413
      $region54: #{tpu_custom_call.1} parent=5 // pred_check_branch
        %416 = sbr.rel (%p414) target = $region56
      $region55: #{tpu_custom_call.1} parent=5 // pred_region
        %s417 = ssub.s32 %s17, 2
        // Predicated region
        $region57: #{tpu_custom_call.1} parent=55 // pred_check
          %p418 = pneg %p161
        $region58: #{tpu_custom_call.1} parent=55 // pred_check_branch
          %420 = sbr.rel (%p418) target = $region60
        $region59: #{tpu_custom_call.1} parent=55 // pred_region
          %s421 = sand.u32 %s146, 1
          %s422 = scalar_lea.sflag [#allocation4], %s421
          %s423 = sand.u32 %s146, 1
          %s424 = smul.addr %s423, 16
          %s425 = scalar_lea.vmem [#allocation8], %s424
          %427 = dma.done %s422, 256
        $region60: #{tpu_custom_call.1} parent=55 // pred_fallthru
          _
      $region56: #{tpu_custom_call.1} parent=5 // pred_fallthru
        _
    $region6: #{tpu_custom_call.1} parent=1 // loop_footer
      %s21 = sadd.s32 1, %s17
    $region7: #{tpu_custom_call.1} parent=1 // loop_footer_branch
      %16 = sbr.rel target = $region3
    $region8: #{tpu_custom_call.1} parent=1 // loop_exit
      _
    %428 = vsyncpa [#allocation3], 1
    %s429 = scalar_lea.sflag [#allocation3], 1
    %430 = vsyncpa %s429, 1
    %431 = vsyncpa [#allocation6], 1
    %432 = vsyncpa [#allocation4], 1
    %s433 = scalar_lea.sflag [#allocation4], 1
    %434 = vsyncpa %s433, 1

</llo_original>
